<compile_context>
chip_gen: v6e
topology: v6e:2x2x1
jax: 0.10.0
libtpu: 0.0.40
codegen_flags: <defaults>
</compile_context>

<pallas_src>
import functools

import jax
import jax.numpy as jnp
from jax.experimental import pallas as pl
from jax.experimental.pallas import tpu as pltpu

_ACT = {
    'relu':    lambda x: jnp.maximum(x, 0.0),
    'tanh':    jnp.tanh,
    'sigmoid': jax.nn.sigmoid,
    None:      lambda x: x,
}

_LANE = 128      # lane width (last dim)
_SUBLANE = 8     # sublane width (second-to-last dim)
_MiB = 1024 * 1024


def _round_up(v, m):
    return ((v + m - 1) // m) * m


def _fused_mlp_kernel(x_ref, *refs, n_layers, activation, final_activation,
                      compute_dtype):
    """Whole MLP for one batch tile: MXU matmuls + VPU/EUP activations, on-chip."""
    out_ref = refs[-1]
    wb_refs = refs[:-1]                      # interleaved: w0, b0, w1, b1, ...
    h = x_ref[...].astype(jnp.float32)       # (tm, F0_pad), activation math in f32
    for layer in range(n_layers):
        w_ref = wb_refs[2 * layer]           # (Fin_pad, Fout_pad), bf16
        b_ref = wb_refs[2 * layer + 1]       # (1, Fout_pad), bf16
        # bias seeds the f32 accumulator; bf16 inputs -> native MXU path.
        y = b_ref[...].astype(jnp.float32) + jnp.dot(
            h.astype(compute_dtype), w_ref[...],
            preferred_element_type=jnp.float32)
        act = activation if layer != n_layers - 1 else final_activation
        h = _ACT[act](y)                     # f32 on VPU/EUP
    out_ref[...] = h.astype(out_ref.dtype)


def _resident_spec(shape):
    """Constant-index, single-buffered BlockSpec for VMEM-resident weights/biases."""
    try:
        return pl.BlockSpec(shape, lambda i: (0, 0), pipeline_mode=pl.Buffered(1))
    except (TypeError, AttributeError):
        # Older jax without pipeline_mode/Buffered: fall back to default buffering.
        return pl.BlockSpec(shape, lambda i: (0, 0))


def _physical_vmem_bytes():
    try:
        return int(pltpu.get_tpu_info().vmem_capacity_bytes)
    except Exception:
        return 128 * _MiB   # conservative v5e/v6e default


class MLP:
    """JAX/Pallas port of the PyTorch MLP module (fused single-kernel forward)."""

    def __init__(self, num_neurons, activation='relu', final_activation=None,
                 key=jax.random.PRNGKey(0), param_dtype=jnp.float32,
                 compute_dtype=jnp.bfloat16):
        assert len(num_neurons) > 1, 'Need more than one layer'
        assert activation in _ACT and activation is not None, 'Invalid activation!'
        assert final_activation in _ACT, 'Invalid final activation!'
        self.activation = activation
        self.final_activation = final_activation
        self.num_neurons = list(num_neurons)
        self.param_dtype = param_dtype
        self.compute_dtype = compute_dtype

        self.params = []          # logical (unpadded) f32 params, for reference
        self.padded_params = []   # lane/sublane-aligned bf16 params fed to kernel
        for i in range(len(num_neurons) - 1):
            fan_in, fan_out = num_neurons[i], num_neurons[i + 1]
            key, wk, bk = jax.random.split(key, 3)
            # Deterministic init mimicking torch.nn.Linear's U(-1/sqrt(fan_in), ...)
            bound = 1.0 / (fan_in ** 0.5)
            w = jax.random.uniform(wk, (fan_in, fan_out), param_dtype, -bound, bound)
            b = jax.random.uniform(bk, (1, fan_out), param_dtype, -bound, bound)
            self.params.append((w, b))

            in_pad = _round_up(fan_in, _LANE)
            out_pad = _round_up(fan_out, _LANE)
            # Zero padding keeps padded lanes inert through every layer: padded W
            # rows are zero so garbage in padded input lanes never contributes;
            # padded output cols are sliced off in the wrapper.
            w_pad = (jnp.zeros((in_pad, out_pad), compute_dtype)
                     .at[:fan_in, :fan_out].set(w.astype(compute_dtype)))
            b_pad = (jnp.zeros((1, out_pad), compute_dtype)
                     .at[:, :fan_out].set(b.astype(compute_dtype)))
            self.padded_params.append((w_pad, b_pad))

    def __call__(self, x):
        n_layers = len(self.padded_params)
        B, F0 = x.shape
        F0_pad = self.padded_params[0][0].shape[0]
        FL_pad = self.padded_params[-1][0].shape[1]
        F_out = self.num_neurons[-1]
        out_dtype = x.dtype

        # --- batch tiling (generation-aware) -------------------------------
        B_pad = _round_up(max(B, 1), _SUBLANE)
        if B_pad >= 16:
            # >=2 grid steps so dual-TC chips (v7x) shard the "parallel" axis
            # across both cores; 512-row cap amortizes per-step overhead on
            # v5e/v6e (per-step ~0.35us) without bloating activation VMEM.
            tm = min(512, _round_up(pl.cdiv(B_pad, 2), _SUBLANE))
        else:
            tm = B_pad
        B_pad = _round_up(B_pad, tm)
        x_pad = jnp.zeros((B_pad, F0_pad), x.dtype).at[:B, :F0].set(x)

        # --- flat input list: x, then (w, b) per layer ---------------------
        wb_flat = []
        in_specs = [pl.BlockSpec((tm, F0_pad), lambda i: (i, 0))]
        for (w_pad, b_pad) in self.padded_params:
            wb_flat.extend((w_pad, b_pad))
            # Constant index_map -> weights stay VMEM-resident across batch
            # tiles; single-buffered (block never changes) -> half the VMEM.
            in_specs.append(_resident_spec(w_pad.shape))
            in_specs.append(_resident_spec(b_pad.shape))
        out_spec = pl.BlockSpec((tm, FL_pad), lambda i: (i, 0))

        # --- VMEM budget (single-buffered bf16 weights) ---------------------
        w_itemsize = jnp.dtype(self.compute_dtype).itemsize
        w_bytes = sum(w.size + b.size for w, b in self.padded_params) * w_itemsize
        max_feat = max([F0_pad] + [w.shape[1] for w, _ in self.padded_params])
        est = (w_bytes                                             # resident weights
               + 2 * tm * F0_pad * jnp.dtype(x.dtype).itemsize     # dbl-buffered x tile
               + 2 * tm * FL_pad * jnp.dtype(out_dtype).itemsize   # dbl-buffered out tile
               + 3 * tm * max_feat * 4)                            # f32 intermediates

        cp_kwargs = dict(dimension_semantics=("parallel",))
        if est > 16 * _MiB:   # smallest per-generation default scoped budget (v5e)
            phys = _physical_vmem_bytes()
            cap = max(phys - 8 * _MiB, 16 * _MiB)    # leave headroom; never > physical
            cp_kwargs["vmem_limit_bytes"] = int(min(max(int(est * 1.25), 32 * _MiB), cap))
        # TODO(synk): if the single-buffered bf16 weight stack still exceeds ~50% of
        # physical VMEM (esp. v7x's 64 MiB), stream the largest layer's weights with
        # pltpu.emit_pipeline over K (f32 VMEM accumulator) instead of full residency.

        # --- cost estimate for the XLA scheduler ----------------------------
        flops = 2 * B_pad * sum(w.shape[0] * w.shape[1] for w, _ in self.padded_params)
        trans = 0
        for layer in range(n_layers):
            act = self.activation if layer != n_layers - 1 else self.final_activation
            if act in ('tanh', 'sigmoid'):
                trans += B_pad * self.padded_params[layer][0].shape[1]
        bytes_accessed = int(w_bytes
                             + x_pad.size * jnp.dtype(x_pad.dtype).itemsize
                             + B_pad * FL_pad * jnp.dtype(out_dtype).itemsize)
        cost = pl.CostEstimate(flops=int(flops), transcendentals=int(trans),
                               bytes_accessed=bytes_accessed)

        kernel = functools.partial(
            _fused_mlp_kernel,
            n_layers=n_layers,
            activation=self.activation,
            final_activation=self.final_activation,
            compute_dtype=self.compute_dtype,
        )

        out_pad = pl.pallas_call(
            kernel,
            out_shape=jax.ShapeDtypeStruct((B_pad, FL_pad), out_dtype),
            grid=(B_pad // tm,),
            in_specs=in_specs,
            out_specs=out_spec,
            compiler_params=pltpu.CompilerParams(**cp_kwargs),
            cost_estimate=cost,
        )(x_pad, *wb_flat)

        return out_pad[:B, :F_out]


def _mlp_ref(mlp, x):
    """Pure-JAX reference mirroring the kernel's bf16-matmul / f32-activation path."""
    n_layers = len(mlp.params)
    h = x.astype(jnp.float32)
    for layer_idx, (w, b) in enumerate(mlp.params):
        y = b.astype(jnp.float32) + jnp.dot(
            h.astype(mlp.compute_dtype), w.astype(mlp.compute_dtype),
            preferred_element_type=jnp.float32)
        act = mlp.activation if layer_idx != n_layers - 1 else mlp.final_activation
        h = _ACT[act](y)
    return h


if __name__ == "__main__":
    key = jax.random.PRNGKey(0)
    k_in, k_params = jax.random.split(key)

    # Small shapes consistent with the module: batch=2, neurons [16, 32, 32, 8]
    num_neurons = [16, 32, 32, 8]
    batch = 2
    x = jax.random.normal(k_in, (batch, num_neurons[0]), jnp.float32)

    mlp = MLP(num_neurons, activation='relu', final_activation='sigmoid', key=k_params)
    out = jax.block_until_ready(mlp(x))
    ref = _mlp_ref(mlp, x)
    assert out.shape == (batch, num_neurons[-1])
    assert jnp.allclose(out, ref, atol=1e-3, rtol=1e-3), "mismatch vs pure-JAX reference"

    # Also exercise the no-final-activation path (matches PyTorch final_activation=None).
    mlp2 = MLP([16, 64, 8], activation='tanh', final_activation=None, key=k_params)
    out2 = jax.block_until_ready(mlp2(x))
    ref2 = _mlp_ref(mlp2, x)
    assert jnp.allclose(out2, ref2, atol=1e-3, rtol=1e-3), "mismatch (no final act)"

    print("KERNEL_OK")
</pallas_src>

<mosaic_0001>
module attributes {stable_mosaic.version = 11 : i64} {
  func.func @_fused_mlp_kernel(%arg0: i32, %arg1: memref<8x128xf32, #tpu.memory_space<vmem>>, %arg2: memref<128x128xbf16, #tpu.memory_space<vmem>>, %arg3: memref<1x128xbf16, #tpu.memory_space<vmem>>, %arg4: memref<128x128xbf16, #tpu.memory_space<vmem>>, %arg5: memref<1x128xbf16, #tpu.memory_space<vmem>>, %arg6: memref<128x128xbf16, #tpu.memory_space<vmem>>, %arg7: memref<1x128xbf16, #tpu.memory_space<vmem>>, %arg8: memref<8x128xf32, #tpu.memory_space<vmem>>) attributes {dimension_semantics = [#tpu.dimension_semantics<parallel>], iteration_bounds = array<i64: 1>, scalar_prefetch = 0 : i64, scratch_operands = 0 : i64, tpu.core_type = #tpu.core_type<tc>, window_params = [{transform_indices = @transform_0, window_bounds = array<i64: 8, 128>}, {pipeline_mode = #tpu.pipeline_mode<synchronous>, transform_indices = @transform_1, window_bounds = array<i64: 128, 128>}, {pipeline_mode = #tpu.pipeline_mode<synchronous>, transform_indices = @transform_2, window_bounds = array<i64: 1, 128>}, {pipeline_mode = #tpu.pipeline_mode<synchronous>, transform_indices = @transform_3, window_bounds = array<i64: 128, 128>}, {pipeline_mode = #tpu.pipeline_mode<synchronous>, transform_indices = @transform_4, window_bounds = array<i64: 1, 128>}, {pipeline_mode = #tpu.pipeline_mode<synchronous>, transform_indices = @transform_5, window_bounds = array<i64: 128, 128>}, {pipeline_mode = #tpu.pipeline_mode<synchronous>, transform_indices = @transform_6, window_bounds = array<i64: 1, 128>}, {transform_indices = @transform_7, window_bounds = array<i64: 8, 128>}]} {
    %c0 = arith.constant 0 : index
    %c0_0 = arith.constant 0 : index
    %0 = vector.load %arg1[%c0, %c0_0] : memref<8x128xf32, #tpu.memory_space<vmem>>, vector<8x128xf32>
    %c0_1 = arith.constant 0 : index
    %c0_2 = arith.constant 0 : index
    %1 = vector.load %arg3[%c0_1, %c0_2] : memref<1x128xbf16, #tpu.memory_space<vmem>>, vector<1x128xbf16>
    %2 = arith.extf %1 : vector<1x128xbf16> to vector<1x128xf32>
    %3 = arith.truncf %0 : vector<8x128xf32> to vector<8x128xbf16>
    %c0_3 = arith.constant 0 : index
    %c0_4 = arith.constant 0 : index
    %4 = vector.load %arg2[%c0_3, %c0_4] : memref<128x128xbf16, #tpu.memory_space<vmem>>, vector<128x128xbf16>
    %cst = arith.constant dense<0.000000e+00> : vector<8x128xf32>
    %5 = tpu.matmul %3, %4, %cst {dimension_numbers = #tpu.dot_dimension_numbers<[1], [0], [0], [1], [0, 0, 1, 1], [], []>} : vector<8x128xbf16>, vector<128x128xbf16>, vector<8x128xf32> -> vector<8x128xf32>
    %6 = vector.broadcast %2 : vector<1x128xf32> to vector<8x128xf32>
    %7 = arith.addf %6, %5 : vector<8x128xf32>
    %cst_5 = arith.constant 0.000000e+00 : f32
    %8 = vector.broadcast %cst_5 : f32 to vector<8x128xf32>
    %9 = arith.maximumf %7, %8 : vector<8x128xf32>
    %c0_6 = arith.constant 0 : index
    %c0_7 = arith.constant 0 : index
    %10 = vector.load %arg5[%c0_6, %c0_7] : memref<1x128xbf16, #tpu.memory_space<vmem>>, vector<1x128xbf16>
    %11 = arith.extf %10 : vector<1x128xbf16> to vector<1x128xf32>
    %12 = arith.truncf %9 : vector<8x128xf32> to vector<8x128xbf16>
    %c0_8 = arith.constant 0 : index
    %c0_9 = arith.constant 0 : index
    %13 = vector.load %arg4[%c0_8, %c0_9] : memref<128x128xbf16, #tpu.memory_space<vmem>>, vector<128x128xbf16>
    %cst_10 = arith.constant dense<0.000000e+00> : vector<8x128xf32>
    %14 = tpu.matmul %12, %13, %cst_10 {dimension_numbers = #tpu.dot_dimension_numbers<[1], [0], [0], [1], [0, 0, 1, 1], [], []>} : vector<8x128xbf16>, vector<128x128xbf16>, vector<8x128xf32> -> vector<8x128xf32>
    %15 = vector.broadcast %11 : vector<1x128xf32> to vector<8x128xf32>
    %16 = arith.addf %15, %14 : vector<8x128xf32>
    %cst_11 = arith.constant 0.000000e+00 : f32
    %17 = vector.broadcast %cst_11 : f32 to vector<8x128xf32>
    %18 = arith.maximumf %16, %17 : vector<8x128xf32>
    %c0_12 = arith.constant 0 : index
    %c0_13 = arith.constant 0 : index
    %19 = vector.load %arg7[%c0_12, %c0_13] : memref<1x128xbf16, #tpu.memory_space<vmem>>, vector<1x128xbf16>
    %20 = arith.extf %19 : vector<1x128xbf16> to vector<1x128xf32>
    %21 = arith.truncf %18 : vector<8x128xf32> to vector<8x128xbf16>
    %c0_14 = arith.constant 0 : index
    %c0_15 = arith.constant 0 : index
    %22 = vector.load %arg6[%c0_14, %c0_15] : memref<128x128xbf16, #tpu.memory_space<vmem>>, vector<128x128xbf16>
    %cst_16 = arith.constant dense<0.000000e+00> : vector<8x128xf32>
    %23 = tpu.matmul %21, %22, %cst_16 {dimension_numbers = #tpu.dot_dimension_numbers<[1], [0], [0], [1], [0, 0, 1, 1], [], []>} : vector<8x128xbf16>, vector<128x128xbf16>, vector<8x128xf32> -> vector<8x128xf32>
    %24 = vector.broadcast %20 : vector<1x128xf32> to vector<8x128xf32>
    %25 = arith.addf %24, %23 : vector<8x128xf32>
    %26 = arith.negf %25 : vector<8x128xf32>
    %27 = math.exp %26 : vector<8x128xf32>
    %cst_17 = arith.constant 1.000000e+00 : f32
    %28 = vector.broadcast %cst_17 : f32 to vector<8x128xf32>
    %29 = arith.addf %28, %27 : vector<8x128xf32>
    %30 = arith.divf %28, %29 : vector<8x128xf32>
    %c0_18 = arith.constant 0 : index
    %c0_19 = arith.constant 0 : index
    %31 = vector.load %arg8[%c0_18, %c0_19] : memref<8x128xf32, #tpu.memory_space<vmem>>, vector<8x128xf32>
    tpu.vector_store %arg8[%c0_18, %c0_19], %30 {strides = array<i32>} : memref<8x128xf32, #tpu.memory_space<vmem>>, vector<8x128xf32>,
    return
  }
  func.func @transform_0(%arg0: i32) -> (i32, i32) {
    %c0_i32 = arith.constant 0 : i32
    %c0_i32_0 = arith.constant 0 : i32
    return %arg0, %c0_i32 : i32, i32
  }
  func.func @transform_1(%arg0: i32) -> (i32, i32) {
    %c0_i32 = arith.constant 0 : i32
    %c0_i32_0 = arith.constant 0 : i32
    %c0_i32_1 = arith.constant 0 : i32
    return %c0_i32, %c0_i32_0 : i32, i32
  }
  func.func @transform_2(%arg0: i32) -> (i32, i32) {
    %c0_i32 = arith.constant 0 : i32
    %c0_i32_0 = arith.constant 0 : i32
    %c0_i32_1 = arith.constant 0 : i32
    return %c0_i32, %c0_i32_0 : i32, i32
  }
  func.func @transform_3(%arg0: i32) -> (i32, i32) {
    %c0_i32 = arith.constant 0 : i32
    %c0_i32_0 = arith.constant 0 : i32
    %c0_i32_1 = arith.constant 0 : i32
    return %c0_i32, %c0_i32_0 : i32, i32
  }
  func.func @transform_4(%arg0: i32) -> (i32, i32) {
    %c0_i32 = arith.constant 0 : i32
    %c0_i32_0 = arith.constant 0 : i32
    %c0_i32_1 = arith.constant 0 : i32
    return %c0_i32, %c0_i32_0 : i32, i32
  }
  func.func @transform_5(%arg0: i32) -> (i32, i32) {
    %c0_i32 = arith.constant 0 : i32
    %c0_i32_0 = arith.constant 0 : i32
    %c0_i32_1 = arith.constant 0 : i32
    return %c0_i32, %c0_i32_0 : i32, i32
  }
  func.func @transform_6(%arg0: i32) -> (i32, i32) {
    %c0_i32 = arith.constant 0 : i32
    %c0_i32_0 = arith.constant 0 : i32
    %c0_i32_1 = arith.constant 0 : i32
    return %c0_i32, %c0_i32_0 : i32, i32
  }
  func.func @transform_7(%arg0: i32) -> (i32, i32) {
    %c0_i32 = arith.constant 0 : i32
    %c0_i32_0 = arith.constant 0 : i32
    return %arg0, %c0_i32 : i32, i32
  }
}

</mosaic_0001>

<llo_original>
// kernel: tpu_custom_call.1
$region0: #{tpu_custom_call.1}
  #allocation0 [shape = 'u32[]', space=smem, size = 0x4, offset = 0x4, fixed_abs, tag = 'smem constant byte address 0x4 - core index']
  #allocation1 [shape = 'u32[144,128]{1,0:T(1,128)}', space=vmem, size = 0x12000, scoped, tag = 'internal scratch']
  %s0 = inlined_call_operand.hbm [shape: f32[8,128], index: 0, kind: input, shape index: {}]
  %s1 = inlined_call_operand.hbm [shape: bf16[128,128], index: 1, kind: input, shape index: {}]
  %s2 = inlined_call_operand.vmem [shape: bf16[1,128], index: 2, kind: input, shape index: {}]
  %s3 = inlined_call_operand.hbm [shape: bf16[128,128], index: 3, kind: input, shape index: {}]
  %s4 = inlined_call_operand.vmem [shape: bf16[1,128], index: 4, kind: input, shape index: {}]
  %s5 = inlined_call_operand.hbm [shape: bf16[128,128], index: 5, kind: input, shape index: {}]
  %s6 = inlined_call_operand.vmem [shape: bf16[1,128], index: 6, kind: input, shape index: {}]
  %s7 = inlined_call_operand.hbm [shape: f32[8,128], index: 7, kind: output, shape index: {}]
  %s8 = sld [smem:[#allocation0]]
  $region54: #{tpu_custom_call.1} parent=0
    _
  %s10 = ssub.s32 1, %s8
  %s11 = scalar_select 0, %s10, %s8
  $region1: #{tpu_custom_call.1} parent=0
    #allocation2 [shape = 'u8[4096]{0}', space=vmem, size = 0x1000, scoped, tag = 'input window, operand 0, single buffered']
    #allocation3 [shape = 's32[1]{0}', space=sflag, size = 0x4, scoped, tag = 'scoped memory for tpu_custom_call.1']
    #allocation4 [shape = 's32[1]{0}', space=sflag, size = 0x4, scoped, tag = 'scoped memory for tpu_custom_call.1']
    #allocation5 [shape = 'u8[32768]{0}', space=vmem, size = 0x8000, scoped, tag = 'input window, operand 1, single buffered']
    #allocation6 [shape = 's32[1]{0}', space=sflag, size = 0x4, scoped, tag = 'scoped memory for tpu_custom_call.1']
    #allocation7 [shape = 'u8[32768]{0}', space=vmem, size = 0x8000, scoped, tag = 'input window, operand 3, single buffered']
    #allocation8 [shape = 'u8[32768]{0}', space=vmem, size = 0x8000, scoped, tag = 'input window, operand 5, single buffered']
    #allocation9 [shape = 's32[1]{0}', space=sflag, size = 0x4, scoped, tag = 'scoped memory for tpu_custom_call.1']
    #allocation10 [shape = 'u8[4096]{0}', space=vmem, size = 0x1000, scoped, tag = 'output window, operand 0, single buffered']
    %12 = vsyncpa [#allocation3], 0
    %13 = vsyncpa [#allocation6], 0
    %14 = vsyncpa [#allocation9], 0
    %15 = vsyncpa [#allocation4], 0
    // Predicated region
    $region2: #{tpu_custom_call.1} parent=1 // pred_check
      _
    $region3: #{tpu_custom_call.1} parent=1 // pred_check_branch
      %17 = sbr.rel (0) target = $region5
    $region4: #{tpu_custom_call.1} parent=1 // pred_region
      %s19 = ssub.s32 128, 128
      %20 = vsyncadd [#allocation3], %s19
      %s22 = sshll.u32 [#allocation2], 4
      %s23 = int_to_ptr.vmem [resolvable:$true] %s22
      %25 = dma.hbm_to_vmem [thread:$0]  %s0, 128, %s23, [#allocation3]
    $region5: #{tpu_custom_call.1} parent=1 // pred_fallthru
      _
    // Predicated region
    $region6: #{tpu_custom_call.1} parent=1 // pred_check
      _
    $region7: #{tpu_custom_call.1} parent=1 // pred_check_branch
      %27 = sbr.rel (0) target = $region9
    $region8: #{tpu_custom_call.1} parent=1 // pred_region
      %s29 = ssub.s32 1024, 1024
      %30 = vsyncadd [#allocation6], %s29
      %s31 = sshll.u32 [#allocation5], 4
      %s32 = int_to_ptr.vmem [resolvable:$true] %s31
      %37 = dma.hbm_to_vmem [thread:$0]  %s1, 1024, %s32, [#allocation6], 64, 64, 4
    $region9: #{tpu_custom_call.1} parent=1 // pred_fallthru
      _
    // Predicated region
    $region10: #{tpu_custom_call.1} parent=1 // pred_check
      _
    $region11: #{tpu_custom_call.1} parent=1 // pred_check_branch
      %39 = sbr.rel (0) target = $region13
    $region12: #{tpu_custom_call.1} parent=1 // pred_region
      _
    $region13: #{tpu_custom_call.1} parent=1 // pred_fallthru
      _
    // Predicated region
    $region14: #{tpu_custom_call.1} parent=1 // pred_check
      _
    $region15: #{tpu_custom_call.1} parent=1 // pred_check_branch
      %41 = sbr.rel (0) target = $region17
    $region16: #{tpu_custom_call.1} parent=1 // pred_region
      %s43 = ssub.s32 1024, 1024
      %44 = vsyncadd [#allocation6], %s43
      %s45 = sshll.u32 [#allocation7], 4
      %s46 = int_to_ptr.vmem [resolvable:$true] %s45
      %51 = dma.hbm_to_vmem [thread:$0]  %s3, 1024, %s46, [#allocation6], 64, 64, 4
    $region17: #{tpu_custom_call.1} parent=1 // pred_fallthru
      _
    // Predicated region
    $region18: #{tpu_custom_call.1} parent=1 // pred_check
      _
    $region19: #{tpu_custom_call.1} parent=1 // pred_check_branch
      %53 = sbr.rel (0) target = $region21
    $region20: #{tpu_custom_call.1} parent=1 // pred_region
      _
    $region21: #{tpu_custom_call.1} parent=1 // pred_fallthru
      _
    // Predicated region
    $region22: #{tpu_custom_call.1} parent=1 // pred_check
      _
    $region23: #{tpu_custom_call.1} parent=1 // pred_check_branch
      %55 = sbr.rel (0) target = $region25
    $region24: #{tpu_custom_call.1} parent=1 // pred_region
      %s57 = ssub.s32 1024, 1024
      %58 = vsyncadd [#allocation9], %s57
      %s59 = sshll.u32 [#allocation8], 4
      %s60 = int_to_ptr.vmem [resolvable:$true] %s59
      %65 = dma.hbm_to_vmem [thread:$0]  %s5, 1024, %s60, [#allocation9], 64, 64, 4
    $region25: #{tpu_custom_call.1} parent=1 // pred_fallthru
      _
    // Predicated region
    $region26: #{tpu_custom_call.1} parent=1 // pred_check
      _
    $region27: #{tpu_custom_call.1} parent=1 // pred_check_branch
      %67 = sbr.rel (0) target = $region29
    $region28: #{tpu_custom_call.1} parent=1 // pred_region
      _
    $region29: #{tpu_custom_call.1} parent=1 // pred_fallthru
      _
    // Predicated region
    $region30: #{tpu_custom_call.1} parent=1 // pred_check
      _
    $region31: #{tpu_custom_call.1} parent=1 // pred_check_branch
      %69 = sbr.rel (0) target = $region33
    $region32: #{tpu_custom_call.1} parent=1 // pred_region
      %70 = dma.done [#allocation3], 128
    $region33: #{tpu_custom_call.1} parent=1 // pred_fallthru
      _
    // Predicated region
    $region34: #{tpu_custom_call.1} parent=1 // pred_check
      _
    $region35: #{tpu_custom_call.1} parent=1 // pred_check_branch
      %72 = sbr.rel (0) target = $region37
    $region36: #{tpu_custom_call.1} parent=1 // pred_region
      %73 = dma.done [#allocation6], 1024
    $region37: #{tpu_custom_call.1} parent=1 // pred_fallthru
      _
    // Predicated region
    $region38: #{tpu_custom_call.1} parent=1 // pred_check
      _
    $region39: #{tpu_custom_call.1} parent=1 // pred_check_branch
      %75 = sbr.rel (0) target = $region41
    $region40: #{tpu_custom_call.1} parent=1 // pred_region
      %76 = dma.done [#allocation6], 1024
    $region41: #{tpu_custom_call.1} parent=1 // pred_fallthru
      _
    // Predicated region
    $region42: #{tpu_custom_call.1} parent=1 // pred_check
      _
    $region43: #{tpu_custom_call.1} parent=1 // pred_check_branch
      %78 = sbr.rel (0) target = $region45
    $region44: #{tpu_custom_call.1} parent=1 // pred_region
      %79 = dma.done [#allocation9], 1024
    $region45: #{tpu_custom_call.1} parent=1 // pred_fallthru
      _
    %v81 = vld [vmem:[#allocation2] sm:$0xff]
    %v82 = vld [vmem:[%s2] sm:$0x1]
    %v83 = vunpack.c.l.bf16 %v82
    %v84 = vpack.c.bf16 %v81, %v81
    %v85 = vld [vmem:[#allocation5] sm:$0xf]
    %v86 = vld [vmem:[#allocation5 + $0x4] sm:$0xf]
    %v87 = vld [vmem:[#allocation5 + $0x8] sm:$0xf]
    %v88 = vld [vmem:[#allocation5 + $0xc] sm:$0xf]
    %v89 = vld [vmem:[#allocation5 + $0x10] sm:$0xf]
    %v90 = vld [vmem:[#allocation5 + $0x14] sm:$0xf]
    %v91 = vld [vmem:[#allocation5 + $0x18] sm:$0xf]
    %v92 = vld [vmem:[#allocation5 + $0x1c] sm:$0xf]
    %v93 = vld [vmem:[#allocation5 + $0x20] sm:$0xf]
    %v94 = vld [vmem:[#allocation5 + $0x24] sm:$0xf]
    %v95 = vld [vmem:[#allocation5 + $0x28] sm:$0xf]
    %v96 = vld [vmem:[#allocation5 + $0x2c] sm:$0xf]
    %v97 = vld [vmem:[#allocation5 + $0x30] sm:$0xf]
    %v98 = vld [vmem:[#allocation5 + $0x34] sm:$0xf]
    %v99 = vld [vmem:[#allocation5 + $0x38] sm:$0xf]
    %v100 = vld [vmem:[#allocation5 + $0x3c] sm:$0xf]
    %v117 = vunpack.c.l.b16 %v85
    %v118 = vunpack.c.l.b16 %v86
    %v119 = vunpack.c.l.b16 %v87
    %v120 = vunpack.c.l.b16 %v88
    %v121 = vunpack.c.l.b16 %v89
    %v122 = vunpack.c.l.b16 %v90
    %v123 = vunpack.c.l.b16 %v91
    %v124 = vunpack.c.l.b16 %v92
    %v125 = vunpack.c.l.b16 %v93
    %v126 = vunpack.c.l.b16 %v94
    %v127 = vunpack.c.l.b16 %v95
    %v128 = vunpack.c.l.b16 %v96
    %v129 = vunpack.c.l.b16 %v97
    %v130 = vunpack.c.l.b16 %v98
    %v131 = vunpack.c.l.b16 %v99
    %v132 = vunpack.c.l.b16 %v100
    %v133 = vpack.c.b16 %v118, %v117
    %v134 = vpack.c.b16 %v120, %v119
    %v135 = vpack.c.b16 %v122, %v121
    %v136 = vpack.c.b16 %v124, %v123
    %v137 = vpack.c.b16 %v126, %v125
    %v138 = vpack.c.b16 %v128, %v127
    %v139 = vpack.c.b16 %v130, %v129
    %v140 = vpack.c.b16 %v132, %v131
    %149 = vmatprep.subr.bf16.mxu0 0
    %150 = vmatpush1.bf16.msra.mxu0 %v140
    %151 = vmatprep.subr.bf16.mxu0 0
    %152 = vmatpush1.bf16.msra.mxu0 %v139
    %153 = vmatprep.subr.bf16.mxu0 0
    %154 = vmatpush1.bf16.msra.mxu0 %v138
    %155 = vmatprep.subr.bf16.mxu0 0
    %156 = vmatpush1.bf16.msra.mxu0 %v137
    %157 = vmatprep.subr.bf16.mxu0 0
    %158 = vmatpush1.bf16.msra.mxu0 %v136
    %159 = vmatprep.subr.bf16.mxu0 0
    %160 = vmatpush1.bf16.msra.mxu0 %v135
    %161 = vmatprep.subr.bf16.mxu0 0
    %162 = vmatpush1.bf16.msra.mxu0 %v134
    %163 = vmatprep.subr.bf16.mxu0 0
    %164 = vmatpush1.bf16.msra.mxu0 %v133
    %165 = vmatprep.subr.bf16.mxu0 0
    %166 = vmatpush2.bf16.msra.mxu0 0
    %167 = vmatprep.subr.bf16.mxu0 0
    %168 = vmatpush2.bf16.msra.mxu0 0
    %169 = vmatprep.subr.bf16.mxu0 0
    %170 = vmatpush2.bf16.msra.mxu0 0
    %171 = vmatprep.subr.bf16.mxu0 0
    %172 = vmatpush2.bf16.msra.mxu0 0
    %173 = vmatprep.subr.bf16.mxu0 0
    %174 = vmatpush2.bf16.msra.mxu0 0
    %175 = vmatprep.subr.bf16.mxu0 0
    %176 = vmatpush2.bf16.msra.mxu0 0
    %177 = vmatprep.subr.bf16.mxu0 0
    %178 = vmatpush2.bf16.msra.mxu0 0
    %179 = vmatprep.subr.bf16.mxu0 0
    %180 = vmatpush2.bf16.msra.mxu0 0
    %181 = vmatprep.mubr.bf16.mxu0 0
    %182 = vmatmul.mubr.bf16.gmra.mxu0 %v84
    %v183 = vpop.f32.mrf.mxu0
    %v184 = vadd.f32 0.0, %v183
    %v185 = vpop.f32.mrf.mxu0
    %v186 = vpop.f32.mrf.mxu0
    %v187 = vpop.f32.mrf.mxu0
    %188 = vdwg.mxu0
    %v189 = vlaneseq
    %v190 = vshrl.u32 %v189, 7
    %v191 = vsub.s32 0, %v190
    %v192 = vrot.slane %v83, %v191
    %v193 = vadd.f32 %v192, %v184
    %v194 = vmax.f32 %v193, 0.0
    %v195 = vld [vmem:[%s4] sm:$0x1]
    %v196 = vunpack.c.l.bf16 %v195
    %v197 = vpack.c.bf16 %v194, %v194
    %v198 = vld [vmem:[#allocation7] sm:$0xf]
    %v199 = vld [vmem:[#allocation7 + $0x4] sm:$0xf]
    %v200 = vld [vmem:[#allocation7 + $0x8] sm:$0xf]
    %v201 = vld [vmem:[#allocation7 + $0xc] sm:$0xf]
    %v202 = vld [vmem:[#allocation7 + $0x10] sm:$0xf]
    %v203 = vld [vmem:[#allocation7 + $0x14] sm:$0xf]
    %v204 = vld [vmem:[#allocation7 + $0x18] sm:$0xf]
    %v205 = vld [vmem:[#allocation7 + $0x1c] sm:$0xf]
    %v206 = vld [vmem:[#allocation7 + $0x20] sm:$0xf]
    %v207 = vld [vmem:[#allocation7 + $0x24] sm:$0xf]
    %v208 = vld [vmem:[#allocation7 + $0x28] sm:$0xf]
    %v209 = vld [vmem:[#allocation7 + $0x2c] sm:$0xf]
    %v210 = vld [vmem:[#allocation7 + $0x30] sm:$0xf]
    %v211 = vld [vmem:[#allocation7 + $0x34] sm:$0xf]
    %v212 = vld [vmem:[#allocation7 + $0x38] sm:$0xf]
    %v213 = vld [vmem:[#allocation7 + $0x3c] sm:$0xf]
    %v230 = vunpack.c.l.b16 %v198
    %v231 = vunpack.c.l.b16 %v199
    %v232 = vunpack.c.l.b16 %v200
    %v233 = vunpack.c.l.b16 %v201
    %v234 = vunpack.c.l.b16 %v202
    %v235 = vunpack.c.l.b16 %v203
    %v236 = vunpack.c.l.b16 %v204
    %v237 = vunpack.c.l.b16 %v205
    %v238 = vunpack.c.l.b16 %v206
    %v239 = vunpack.c.l.b16 %v207
    %v240 = vunpack.c.l.b16 %v208
    %v241 = vunpack.c.l.b16 %v209
    %v242 = vunpack.c.l.b16 %v210
    %v243 = vunpack.c.l.b16 %v211
    %v244 = vunpack.c.l.b16 %v212
    %v245 = vunpack.c.l.b16 %v213
    %v246 = vpack.c.b16 %v231, %v230
    %v247 = vpack.c.b16 %v233, %v232
    %v248 = vpack.c.b16 %v235, %v234
    %v249 = vpack.c.b16 %v237, %v236
    %v250 = vpack.c.b16 %v239, %v238
    %v251 = vpack.c.b16 %v241, %v240
    %v252 = vpack.c.b16 %v243, %v242
    %v253 = vpack.c.b16 %v245, %v244
    %262 = vmatprep.subr.bf16.mxu0 0
    %263 = vmatpush1.bf16.msra.mxu0 %v253
    %264 = vmatprep.subr.bf16.mxu0 0
    %265 = vmatpush1.bf16.msra.mxu0 %v252
    %266 = vmatprep.subr.bf16.mxu0 0
    %267 = vmatpush1.bf16.msra.mxu0 %v251
    %268 = vmatprep.subr.bf16.mxu0 0
    %269 = vmatpush1.bf16.msra.mxu0 %v250
    %270 = vmatprep.subr.bf16.mxu0 0
    %271 = vmatpush1.bf16.msra.mxu0 %v249
    %272 = vmatprep.subr.bf16.mxu0 0
    %273 = vmatpush1.bf16.msra.mxu0 %v248
    %274 = vmatprep.subr.bf16.mxu0 0
    %275 = vmatpush1.bf16.msra.mxu0 %v247
    %276 = vmatprep.subr.bf16.mxu0 0
    %277 = vmatpush1.bf16.msra.mxu0 %v246
    %278 = vmatprep.subr.bf16.mxu0 0
    %279 = vmatpush2.bf16.msra.mxu0 0
    %280 = vmatprep.subr.bf16.mxu0 0
    %281 = vmatpush2.bf16.msra.mxu0 0
    %282 = vmatprep.subr.bf16.mxu0 0
    %283 = vmatpush2.bf16.msra.mxu0 0
    %284 = vmatprep.subr.bf16.mxu0 0
    %285 = vmatpush2.bf16.msra.mxu0 0
    %286 = vmatprep.subr.bf16.mxu0 0
    %287 = vmatpush2.bf16.msra.mxu0 0
    %288 = vmatprep.subr.bf16.mxu0 0
    %289 = vmatpush2.bf16.msra.mxu0 0
    %290 = vmatprep.subr.bf16.mxu0 0
    %291 = vmatpush2.bf16.msra.mxu0 0
    %292 = vmatprep.subr.bf16.mxu0 0
    %293 = vmatpush2.bf16.msra.mxu0 0
    %294 = vmatprep.mubr.bf16.mxu0 0
    %295 = vmatmul.mubr.bf16.gmra.mxu0 %v197
    %v296 = vpop.f32.mrf.mxu0
    %v297 = vadd.f32 0.0, %v296
    %v298 = vpop.f32.mrf.mxu0
    %v299 = vpop.f32.mrf.mxu0
    %v300 = vpop.f32.mrf.mxu0
    %301 = vdwg.mxu0
    %v302 = vlaneseq
    %v303 = vshrl.u32 %v302, 7
    %v304 = vsub.s32 0, %v303
    %v305 = vrot.slane %v196, %v304
    %v306 = vadd.f32 %v305, %v297
    %v307 = vmax.f32 %v306, 0.0
    %v308 = vld [vmem:[%s6] sm:$0x1]
    %v309 = vunpack.c.l.bf16 %v308
    %v310 = vpack.c.bf16 %v307, %v307
    %v311 = vld [vmem:[#allocation8] sm:$0xf]
    %v312 = vld [vmem:[#allocation8 + $0x4] sm:$0xf]
    %v313 = vld [vmem:[#allocation8 + $0x8] sm:$0xf]
    %v314 = vld [vmem:[#allocation8 + $0xc] sm:$0xf]
    %v315 = vld [vmem:[#allocation8 + $0x10] sm:$0xf]
    %v316 = vld [vmem:[#allocation8 + $0x14] sm:$0xf]
    %v317 = vld [vmem:[#allocation8 + $0x18] sm:$0xf]
    %v318 = vld [vmem:[#allocation8 + $0x1c] sm:$0xf]
    %v319 = vld [vmem:[#allocation8 + $0x20] sm:$0xf]
    %v320 = vld [vmem:[#allocation8 + $0x24] sm:$0xf]
    %v321 = vld [vmem:[#allocation8 + $0x28] sm:$0xf]
    %v322 = vld [vmem:[#allocation8 + $0x2c] sm:$0xf]
    %v323 = vld [vmem:[#allocation8 + $0x30] sm:$0xf]
    %v324 = vld [vmem:[#allocation8 + $0x34] sm:$0xf]
    %v325 = vld [vmem:[#allocation8 + $0x38] sm:$0xf]
    %v326 = vld [vmem:[#allocation8 + $0x3c] sm:$0xf]
    %v343 = vunpack.c.l.b16 %v311
    %v344 = vunpack.c.l.b16 %v312
    %v345 = vunpack.c.l.b16 %v313
    %v346 = vunpack.c.l.b16 %v314
    %v347 = vunpack.c.l.b16 %v315
    %v348 = vunpack.c.l.b16 %v316
    %v349 = vunpack.c.l.b16 %v317
    %v350 = vunpack.c.l.b16 %v318
    %v351 = vunpack.c.l.b16 %v319
    %v352 = vunpack.c.l.b16 %v320
    %v353 = vunpack.c.l.b16 %v321
    %v354 = vunpack.c.l.b16 %v322
    %v355 = vunpack.c.l.b16 %v323
    %v356 = vunpack.c.l.b16 %v324
    %v357 = vunpack.c.l.b16 %v325
    %v358 = vunpack.c.l.b16 %v326
    %v359 = vpack.c.b16 %v344, %v343
    %v360 = vpack.c.b16 %v346, %v345
    %v361 = vpack.c.b16 %v348, %v347
    %v362 = vpack.c.b16 %v350, %v349
    %v363 = vpack.c.b16 %v352, %v351
    %v364 = vpack.c.b16 %v354, %v353
    %v365 = vpack.c.b16 %v356, %v355
    %v366 = vpack.c.b16 %v358, %v357
    %375 = vmatprep.subr.bf16.mxu0 0
    %376 = vmatpush1.bf16.msra.mxu0 %v366
    %377 = vmatprep.subr.bf16.mxu0 0
    %378 = vmatpush1.bf16.msra.mxu0 %v365
    %379 = vmatprep.subr.bf16.mxu0 0
    %380 = vmatpush1.bf16.msra.mxu0 %v364
    %381 = vmatprep.subr.bf16.mxu0 0
    %382 = vmatpush1.bf16.msra.mxu0 %v363
    %383 = vmatprep.subr.bf16.mxu0 0
    %384 = vmatpush1.bf16.msra.mxu0 %v362
    %385 = vmatprep.subr.bf16.mxu0 0
    %386 = vmatpush1.bf16.msra.mxu0 %v361
    %387 = vmatprep.subr.bf16.mxu0 0
    %388 = vmatpush1.bf16.msra.mxu0 %v360
    %389 = vmatprep.subr.bf16.mxu0 0
    %390 = vmatpush1.bf16.msra.mxu0 %v359
    %391 = vmatprep.subr.bf16.mxu0 0
    %392 = vmatpush2.bf16.msra.mxu0 0
    %393 = vmatprep.subr.bf16.mxu0 0
    %394 = vmatpush2.bf16.msra.mxu0 0
    %395 = vmatprep.subr.bf16.mxu0 0
    %396 = vmatpush2.bf16.msra.mxu0 0
    %397 = vmatprep.subr.bf16.mxu0 0
    %398 = vmatpush2.bf16.msra.mxu0 0
    %399 = vmatprep.subr.bf16.mxu0 0
    %400 = vmatpush2.bf16.msra.mxu0 0
    %401 = vmatprep.subr.bf16.mxu0 0
    %402 = vmatpush2.bf16.msra.mxu0 0
    %403 = vmatprep.subr.bf16.mxu0 0
    %404 = vmatpush2.bf16.msra.mxu0 0
    %405 = vmatprep.subr.bf16.mxu0 0
    %406 = vmatpush2.bf16.msra.mxu0 0
    %407 = vmatprep.mubr.bf16.mxu0 0
    %408 = vmatmul.mubr.bf16.gmra.mxu0 %v310
    %v409 = vpop.f32.mrf.mxu0
    %v410 = vadd.f32 0.0, %v409
    %v411 = vpop.f32.mrf.mxu0
    %v412 = vpop.f32.mrf.mxu0
    %v413 = vpop.f32.mrf.mxu0
    %414 = vdwg.mxu0
    %v415 = vlaneseq
    %v416 = vshrl.u32 %v415, 7
    %v417 = vsub.s32 0, %v416
    %v418 = vrot.slane %v309, %v417
    %v419 = vadd.f32 %v418, %v410
    %v420 = vxor.u32 %v419, 2147483648
    %v421 = vmul.f32 %v420, 1.442695
    %v422 = vpow.pop %v421
    %v423 = vadd.f32 %v422, 1.0
    %v424 = vrcp.pop %v423
    %v425 = vmul.f32 1.0, %v424
    %426 = vst [vmem:[#allocation10] sm:$0xff] %v425
    // Predicated region
    $region46: #{tpu_custom_call.1} parent=1 // pred_check
      _
    $region47: #{tpu_custom_call.1} parent=1 // pred_check_branch
      %428 = sbr.rel (0) target = $region49
    $region48: #{tpu_custom_call.1} parent=1 // pred_region
      %s430 = ssub.s32 128, 128
      %431 = vsyncadd [#allocation4], %s430
      %s433 = sshll.u32 [#allocation10], 4
      %s434 = int_to_ptr.vmem [resolvable:$true] %s433
      %436 = dma.vmem_to_hbm [thread:$0]  %s434, 128, %s7, [#allocation4]
    $region49: #{tpu_custom_call.1} parent=1 // pred_fallthru
      _
    // Predicated region
    $region50: #{tpu_custom_call.1} parent=1 // pred_check
      _
    $region51: #{tpu_custom_call.1} parent=1 // pred_check_branch
      %438 = sbr.rel (0) target = $region53
    $region52: #{tpu_custom_call.1} parent=1 // pred_region
      %439 = dma.done [#allocation4], 128
    $region53: #{tpu_custom_call.1} parent=1 // pred_fallthru
      _
    %440 = vsyncpa [#allocation3], 1
    %441 = vsyncpa [#allocation6], 1
    %442 = vsyncpa [#allocation9], 1
    %443 = vsyncpa [#allocation4], 1

</llo_original>
